<compile_context>
chip_gen: v7x
topology: tpu7x:2x2x1
jax: 0.10.0
libtpu: 0.0.40
codegen_flags: <defaults>
</compile_context>

<pallas_src>
import functools
import math

import jax
import jax.numpy as jnp
from jax.experimental import pallas as pl
from jax.experimental.pallas import tpu as pltpu


# ----------------------------------------------------------------------------
# Pallas encoder-layer kernel (attention + FFN + LayerNorms, one batch / step)
# ----------------------------------------------------------------------------
def _ln(x, g, b, eps=1e-12):
    mu = jnp.mean(x, axis=-1, keepdims=True)
    var = jnp.mean((x - mu) ** 2, axis=-1, keepdims=True)
    return (x - mu) * jax.lax.rsqrt(var + eps) * g + b


def encoder_layer_kernel(x_ref, bias_ref,
                         wqkv_ref, bqkv_ref, wo_ref, w1_ref, b1_ref, w2_ref,
                         vec_ref, out_ref, ctx_ref, *, num_heads, head_dim):
    # vec_ref rows: 0=bo, 1=ln1_g, 2=ln1_b, 3=b2, 4=ln2_g, 5=ln2_b   (f32 [6,H])
    S = x_ref.shape[1]
    H = x_ref.shape[2]

    h = x_ref[0].astype(jnp.float32)                       # [S, H]  f32
    h_bf = h.astype(jnp.bfloat16)

    # additive key-mask bias, broadcast ONCE (not per head)
    bias_b = jnp.broadcast_to(bias_ref[0].astype(jnp.float32), (S, S))   # [S, S]

    # fused QKV projection: one bf16 MXU pass with N = 3H
    qkv = jnp.dot(h_bf, wqkv_ref[...], preferred_element_type=jnp.float32)
    qkv = qkv + bqkv_ref[...]                              # [S, 3H] f32

    scale = 1.0 / math.sqrt(head_dim)
    q = (qkv[:, :H] * scale).astype(jnp.bfloat16)
    k = qkv[:, H:2 * H].astype(jnp.bfloat16)
    v = qkv[:, 2 * H:].astype(jnp.bfloat16)

    # per-head attention; each head's context goes straight into VMEM scratch
    # via a static column slice (no concatenate).
    for hd in range(num_heads):                            # static unrolled loop
        sl = slice(hd * head_dim, (hd + 1) * head_dim)
        qh, kh, vh = q[:, sl], k[:, sl], v[:, sl]
        scores = jax.lax.dot_general(qh, kh, (((1,), (1,)), ((), ())),
                                     preferred_element_type=jnp.float32)
        scores = scores + bias_b
        m = jnp.max(scores, axis=-1, keepdims=True)
        p = jnp.exp(scores - m)
        denom = jnp.sum(p, axis=-1, keepdims=True)
        p = p * pl.reciprocal(denom, approx=True)          # EUP, not VALU divide
        ctx_ref[:, sl] = jnp.dot(p.astype(jnp.bfloat16), vh,
                                 preferred_element_type=jnp.float32)

    ctx = ctx_ref[...]                                     # [S, H] f32

    attn = jnp.dot(ctx.astype(jnp.bfloat16), wo_ref[...],
                   preferred_element_type=jnp.float32) + vec_ref[0:1, :]
    h1 = _ln(h + attn, vec_ref[1:2, :], vec_ref[2:3, :])

    ff = jnp.dot(h1.astype(jnp.bfloat16), w1_ref[...],
                 preferred_element_type=jnp.float32) + b1_ref[...]
    # TODO(synk): HF/PyTorch BERT uses exact erf GELU; tanh approximation kept
    # here (small, systematic numerical difference).
    ff = jax.nn.gelu(ff, approximate=True)
    ff = jnp.dot(ff.astype(jnp.bfloat16), w2_ref[...],
                 preferred_element_type=jnp.float32) + vec_ref[3:4, :]
    out = _ln(h1 + ff, vec_ref[4:5, :], vec_ref[5:6, :])

    out_ref[0] = out.astype(out_ref.dtype)


_PACKED_KEYS = ('w_qkv', 'b_qkv', 'wo', 'w1', 'b1', 'w2', 'vecs')


def encoder_layer(x, bias, lp, num_heads):
    """x: [B,S,H] f32, bias: [B,1,S] additive key mask, lp: packed layer params."""
    B, S, H = x.shape
    F = lp['w1'].shape[1]
    weights = [lp[k] for k in _PACKED_KEYS]

    def full_spec(a):
        return pl.BlockSpec(a.shape, lambda b, _nd=a.ndim: (0,) * _nd)

    in_specs = ([pl.BlockSpec((1, S, H), lambda b: (b, 0, 0)),
                 pl.BlockSpec((1, 1, S), lambda b: (b, 0, 0))]
                + [full_spec(w) for w in weights])

    # advisory cost hint so XLA schedules the layer against the glue ops
    flops = B * (2 * S * H * 3 * H          # fused QKV
                 + 4 * S * S * H            # QK^T + PV over all heads
                 + 2 * S * H * H            # output projection
                 + 4 * S * H * F)           # FFN (w1 + w2)
    transcendentals = B * S * (num_heads * S + F + S)
    bytes_accessed = (sum(int(w.size) * w.dtype.itemsize for w in weights)
                      + 2 * B * S * H * 4 + B * S * 4)
    cost = pl.CostEstimate(flops=int(flops),
                           transcendentals=int(transcendentals),
                           bytes_accessed=int(bytes_accessed))

    kernel = functools.partial(encoder_layer_kernel,
                               num_heads=num_heads, head_dim=H // num_heads)
    return pl.pallas_call(
        kernel,
        out_shape=jax.ShapeDtypeStruct((B, S, H), jnp.float32),
        grid=(B,),
        in_specs=in_specs,
        out_specs=pl.BlockSpec((1, S, H), lambda b: (b, 0, 0)),
        scratch_shapes=[pltpu.VMEM((S, H), jnp.float32)],   # per-head context
        compiler_params=pltpu.CompilerParams(dimension_semantics=("parallel",)),
        cost_estimate=cost,
    )(x, bias, *weights)


# ----------------------------------------------------------------------------
# Synthetic BERT-style encoder (embeddings are plain-JAX glue)
# ----------------------------------------------------------------------------
def bert_embed(params, input_ids=None, inputs_embeds=None):
    if inputs_embeds is None:
        inputs_embeds = jnp.take(params['word_emb'], input_ids, axis=0)
    S = inputs_embeds.shape[1]
    x = inputs_embeds + params['pos_emb'][None, :S, :]
    return _ln(x, params['emb_ln_g'], params['emb_ln_b'])   # embedding LN (glue)


def bert_encode(params, x, attn_mask, num_heads):
    bias = ((attn_mask.astype(jnp.float32) - 1.0) * 1e9)[:, None, :]   # [B,1,S]
    for lp in params['layers']:
        x = encoder_layer(x, bias, lp, num_heads)
    return x


def init_bert_params(key, vocab, max_pos, H, F, n_layers):
    """Synthetic BERT params, already packed into the kernel's fused layout:
       w_qkv [H,3H] bf16, b_qkv [1,3H] f32, wo/w1/w2 bf16, b1 [1,F] f32,
       vecs [6,H] f32 = (bo, ln1_g, ln1_b, b2, ln2_g, ln2_b)."""
    keys = jax.random.split(key, 2 + n_layers)
    p = {
        'word_emb': jax.random.normal(keys[0], (vocab, H), jnp.float32) * 0.02,
        'pos_emb': jax.random.normal(keys[1], (max_pos, H), jnp.float32) * 0.02,
        'emb_ln_g': jnp.ones((1, H), jnp.float32),
        'emb_ln_b': jnp.zeros((1, H), jnp.float32),
        'layers': [],
    }
    for li in range(n_layers):
        lk = jax.random.split(keys[2 + li], 6)
        wq = jax.random.normal(lk[0], (H, H), jnp.float32) * 0.02
        wk = jax.random.normal(lk[1], (H, H), jnp.float32) * 0.02
        wv = jax.random.normal(lk[2], (H, H), jnp.float32) * 0.02
        wo = jax.random.normal(lk[3], (H, H), jnp.float32) * 0.02
        w1 = jax.random.normal(lk[4], (H, F), jnp.float32) * 0.02
        w2 = jax.random.normal(lk[5], (F, H), jnp.float32) * 0.02
        vecs = jnp.stack([jnp.zeros(H), jnp.ones(H), jnp.zeros(H),
                          jnp.zeros(H), jnp.ones(H), jnp.zeros(H)]).astype(jnp.float32)
        p['layers'].append({
            'w_qkv': jnp.concatenate([wq, wk, wv], axis=1).astype(jnp.bfloat16),
            'b_qkv': jnp.zeros((1, 3 * H), jnp.float32),
            'wo': wo.astype(jnp.bfloat16),
            'w1': w1.astype(jnp.bfloat16),
            'b1': jnp.zeros((1, F), jnp.float32),
            'w2': w2.astype(jnp.bfloat16),
            'vecs': vecs,
        })
    return p


# ----------------------------------------------------------------------------
# FactAwareModel.forward
# ----------------------------------------------------------------------------
def fact_aware_forward(tf1_params, tf2_params, num_heads,
                       input_ids, attention_mask, facts_ids, facts_mask, facts_count):
    B, S = input_ids.shape
    max_facts, fact_seq = facts_ids.shape[1], facts_ids.shape[2]
    H = tf1_params['word_emb'].shape[1]

    # tf1 over the sentence token sequence -> last hidden state [B,S,H]
    sents_outputs = bert_encode(
        tf1_params, bert_embed(tf1_params, input_ids=input_ids),
        attention_mask, num_heads)

    # tf2 over all facts (flattened over batch*facts). The reference only runs
    # the first facts_count[b] facts per batch; we compute all and zero-mask the
    # padding facts afterwards, which is numerically identical for the output.
    flat_ids = facts_ids.reshape(B * max_facts, fact_seq)
    flat_mask = facts_mask.reshape(B * max_facts, fact_seq)
    facts_outputs = bert_encode(
        tf2_params, bert_embed(tf2_params, input_ids=flat_ids),
        flat_mask, num_heads)
    fact_cls = facts_outputs[:, 0, :].reshape(B, max_facts, H)

    # Static padded length max_facts+1 instead of facts_count.max()+1 (jit-safe,
    # no host sync). Extra slots are masked, so the returned CLS is identical.
    valid = jnp.arange(max_facts)[None, :] < facts_count[:, None]        # [B, max_facts]
    fact_cls = jnp.where(valid[..., None], fact_cls, 0.0)

    sent_fact_emb = jnp.concatenate([sents_outputs[:, :1, :], fact_cls], axis=1)
    sent_fact_mask = jnp.concatenate(
        [jnp.ones((B, 1), jnp.int32), valid.astype(jnp.int32)], axis=1)

    # tf2 again, now over the [CLS(sentence), fact-CLS...] sequence (inputs_embeds path)
    x2 = bert_embed(tf2_params, inputs_embeds=sent_fact_emb)
    out2 = bert_encode(tf2_params, x2, sent_fact_mask, num_heads)
    return out2[:, 0, :]                                                  # [B, H]


# TODO(synk): dropout (hidden_dropout_prob) and layer freezing only matter in
# training; they are no-ops for this inference forward pass.

if __name__ == "__main__":
    B, S = 2, 8
    H, F = 32, 64
    num_heads = 2
    vocab, max_pos = 100, 16
    max_facts, fact_seq = 3, 8
    n_layers = 1

    root = jax.random.PRNGKey(0)
    k_tf1, k_tf2, k_ids, k_fids = jax.random.split(root, 4)
    tf1_params = init_bert_params(k_tf1, vocab, max_pos, H, F, n_layers)
    tf2_params = init_bert_params(k_tf2, vocab, max_pos, H, F, n_layers)

    input_ids = jax.random.randint(k_ids, (B, S), 0, vocab, dtype=jnp.int32)
    attention_mask = jnp.array([[1] * 8, [1] * 6 + [0] * 2], dtype=jnp.int32)
    facts_ids = jax.random.randint(k_fids, (B, max_facts, fact_seq), 0, vocab, dtype=jnp.int32)
    facts_count = jnp.array([2, 3], dtype=jnp.int32)
    fvalid = (jnp.arange(max_facts)[None, :] < facts_count[:, None]).astype(jnp.int32)
    facts_mask = jnp.ones((B, max_facts, fact_seq), dtype=jnp.int32) * fvalid[:, :, None]

    out = fact_aware_forward(tf1_params, tf2_params, num_heads,
                             input_ids, attention_mask, facts_ids, facts_mask, facts_count)
    jax.block_until_ready(out)
    assert out.shape == (B, H) and out.dtype == jnp.float32
    print("KERNEL_OK")
</pallas_src>

<mosaic_0001>
module attributes {stable_mosaic.version = 11 : i64} {
  func.func @encoder_layer_kernel(%arg0: i32, %arg1: memref<1x8x32xf32, #tpu.memory_space<vmem>>, %arg2: memref<1x1x8xf32, #tpu.memory_space<vmem>>, %arg3: memref<32x96xbf16, #tpu.memory_space<vmem>>, %arg4: memref<1x96xf32, #tpu.memory_space<vmem>>, %arg5: memref<32x32xbf16, #tpu.memory_space<vmem>>, %arg6: memref<32x64xbf16, #tpu.memory_space<vmem>>, %arg7: memref<1x64xf32, #tpu.memory_space<vmem>>, %arg8: memref<64x32xbf16, #tpu.memory_space<vmem>>, %arg9: memref<6x32xf32, #tpu.memory_space<vmem>>, %arg10: memref<1x8x32xf32, #tpu.memory_space<vmem>>, %arg11: memref<8x32xf32, #tpu.memory_space<vmem>>) attributes {dimension_semantics = [#tpu.dimension_semantics<parallel>], iteration_bounds = array<i64: 2>, scalar_prefetch = 0 : i64, scratch_operands = 1 : i64, tpu.core_type = #tpu.core_type<tc>, window_params = [{transform_indices = @transform_0, window_bounds = array<i64: 1, 8, 32>}, {transform_indices = @transform_1, window_bounds = array<i64: 1, 1, 8>}, {pipeline_mode = #tpu.pipeline_mode<synchronous>, transform_indices = @transform_2, window_bounds = array<i64: 32, 96>}, {pipeline_mode = #tpu.pipeline_mode<synchronous>, transform_indices = @transform_3, window_bounds = array<i64: 1, 96>}, {pipeline_mode = #tpu.pipeline_mode<synchronous>, transform_indices = @transform_4, window_bounds = array<i64: 32, 32>}, {pipeline_mode = #tpu.pipeline_mode<synchronous>, transform_indices = @transform_5, window_bounds = array<i64: 32, 64>}, {pipeline_mode = #tpu.pipeline_mode<synchronous>, transform_indices = @transform_6, window_bounds = array<i64: 1, 64>}, {pipeline_mode = #tpu.pipeline_mode<synchronous>, transform_indices = @transform_7, window_bounds = array<i64: 64, 32>}, {pipeline_mode = #tpu.pipeline_mode<synchronous>, transform_indices = @transform_8, window_bounds = array<i64: 6, 32>}, {transform_indices = @transform_9, window_bounds = array<i64: 1, 8, 32>}]} {
    %c0 = arith.constant 0 : index
    %c0_0 = arith.constant 0 : index
    %c0_1 = arith.constant 0 : index
    %0 = vector.load %arg1[%c0, %c0_0, %c0_1] : memref<1x8x32xf32, #tpu.memory_space<vmem>>, vector<1x8x32xf32>
    %1 = vector.shape_cast %0 : vector<1x8x32xf32> to vector<8x32xf32>
    %2 = arith.truncf %1 : vector<8x32xf32> to vector<8x32xbf16>
    %c0_2 = arith.constant 0 : index
    %c0_3 = arith.constant 0 : index
    %c0_4 = arith.constant 0 : index
    %3 = vector.load %arg2[%c0_2, %c0_3, %c0_4] : memref<1x1x8xf32, #tpu.memory_space<vmem>>, vector<1x1x8xf32>
    %4 = vector.shape_cast %3 : vector<1x1x8xf32> to vector<1x8xf32>
    %5 = vector.shape_cast %4 : vector<1x8xf32> to vector<1x8xf32>
    %6 = vector.broadcast %5 : vector<1x8xf32> to vector<8x8xf32>
    %c0_5 = arith.constant 0 : index
    %c0_6 = arith.constant 0 : index
    %7 = vector.load %arg3[%c0_5, %c0_6] : memref<32x96xbf16, #tpu.memory_space<vmem>>, vector<32x96xbf16>
    %cst = arith.constant dense<0.000000e+00> : vector<8x96xf32>
    %8 = tpu.matmul %2, %7, %cst {dimension_numbers = #tpu.dot_dimension_numbers<[1], [0], [0], [1], [0, 0, 1, 1], [], []>} : vector<8x32xbf16>, vector<32x96xbf16>, vector<8x96xf32> -> vector<8x96xf32>
    %c0_7 = arith.constant 0 : index
    %c0_8 = arith.constant 0 : index
    %9 = vector.load %arg4[%c0_7, %c0_8] : memref<1x96xf32, #tpu.memory_space<vmem>>, vector<1x96xf32>
    %10 = vector.broadcast %9 : vector<1x96xf32> to vector<8x96xf32>
    %11 = arith.addf %8, %10 : vector<8x96xf32>
    %12 = vector.extract_strided_slice %11 {offsets = [0, 0], sizes = [8, 32], strides = [1, 1]} : vector<8x96xf32> to vector<8x32xf32>
    %cst_9 = arith.constant 2.500000e-01 : f32
    %13 = vector.broadcast %cst_9 : f32 to vector<8x32xf32>
    %14 = arith.mulf %12, %13 : vector<8x32xf32>
    %15 = arith.truncf %14 : vector<8x32xf32> to vector<8x32xbf16>
    %16 = vector.extract_strided_slice %11 {offsets = [0, 32], sizes = [8, 32], strides = [1, 1]} : vector<8x96xf32> to vector<8x32xf32>
    %17 = arith.truncf %16 : vector<8x32xf32> to vector<8x32xbf16>
    %18 = vector.extract_strided_slice %11 {offsets = [0, 64], sizes = [8, 32], strides = [1, 1]} : vector<8x96xf32> to vector<8x32xf32>
    %19 = arith.truncf %18 : vector<8x32xf32> to vector<8x32xbf16>
    %20 = vector.extract_strided_slice %15 {offsets = [0, 0], sizes = [8, 16], strides = [1, 1]} : vector<8x32xbf16> to vector<8x16xbf16>
    %21 = vector.extract_strided_slice %17 {offsets = [0, 0], sizes = [8, 16], strides = [1, 1]} : vector<8x32xbf16> to vector<8x16xbf16>
    %22 = vector.extract_strided_slice %19 {offsets = [0, 0], sizes = [8, 16], strides = [1, 1]} : vector<8x32xbf16> to vector<8x16xbf16>
    %cst_10 = arith.constant dense<0.000000e+00> : vector<8x8xf32>
    %23 = tpu.matmul %20, %21, %cst_10 {dimension_numbers = #tpu.dot_dimension_numbers<[1], [1], [0], [0], [0, 0, 1, 0], [], []>} : vector<8x16xbf16>, vector<8x16xbf16>, vector<8x8xf32> -> vector<8x8xf32>
    %24 = arith.addf %23, %6 : vector<8x8xf32>
    %cst_11 = arith.constant dense<0xFF800000> : vector<8xf32>
    %25 = vector.multi_reduction <maximumf>, %24, %cst_11 [1] : vector<8x8xf32> to vector<8xf32>
    %26 = vector.shape_cast %25 : vector<8xf32> to vector<8x1xf32>
    %27 = vector.broadcast %26 : vector<8x1xf32> to vector<8x8xf32>
    %28 = arith.subf %24, %27 : vector<8x8xf32>
    %29 = math.exp %28 : vector<8x8xf32>
    %cst_12 = arith.constant dense<0.000000e+00> : vector<8xf32>
    %30 = vector.multi_reduction <add>, %29, %cst_12 [1] : vector<8x8xf32> to vector<8xf32>
    %31 = vector.shape_cast %30 : vector<8xf32> to vector<8x1xf32>
    %32 = tpu.reciprocal %31 {approx = true} : vector<8x1xf32> -> vector<8x1xf32>
    %33 = vector.broadcast %32 : vector<8x1xf32> to vector<8x8xf32>
    %34 = arith.mulf %29, %33 : vector<8x8xf32>
    %35 = arith.truncf %34 : vector<8x8xf32> to vector<8x8xbf16>
    %cst_13 = arith.constant dense<0.000000e+00> : vector<8x16xf32>
    %36 = tpu.matmul %35, %22, %cst_13 {dimension_numbers = #tpu.dot_dimension_numbers<[1], [0], [0], [1], [0, 0, 1, 1], [], []>} : vector<8x8xbf16>, vector<8x16xbf16>, vector<8x16xf32> -> vector<8x16xf32>
    %c0_14 = arith.constant 0 : index
    %c0_15 = arith.constant 0 : index
    %37 = vector.load %arg11[%c0_14, %c0_15] : memref<8x32xf32, #tpu.memory_space<vmem>>, vector<8x16xf32>
    tpu.vector_store %arg11[%c0_14, %c0_15], %36 {strides = array<i32>} : memref<8x32xf32, #tpu.memory_space<vmem>>, vector<8x16xf32>,
    %38 = vector.extract_strided_slice %15 {offsets = [0, 16], sizes = [8, 16], strides = [1, 1]} : vector<8x32xbf16> to vector<8x16xbf16>
    %39 = vector.extract_strided_slice %17 {offsets = [0, 16], sizes = [8, 16], strides = [1, 1]} : vector<8x32xbf16> to vector<8x16xbf16>
    %40 = vector.extract_strided_slice %19 {offsets = [0, 16], sizes = [8, 16], strides = [1, 1]} : vector<8x32xbf16> to vector<8x16xbf16>
    %cst_16 = arith.constant dense<0.000000e+00> : vector<8x8xf32>
    %41 = tpu.matmul %38, %39, %cst_16 {dimension_numbers = #tpu.dot_dimension_numbers<[1], [1], [0], [0], [0, 0, 1, 0], [], []>} : vector<8x16xbf16>, vector<8x16xbf16>, vector<8x8xf32> -> vector<8x8xf32>
    %42 = arith.addf %41, %6 : vector<8x8xf32>
    %cst_17 = arith.constant dense<0xFF800000> : vector<8xf32>
    %43 = vector.multi_reduction <maximumf>, %42, %cst_17 [1] : vector<8x8xf32> to vector<8xf32>
    %44 = vector.shape_cast %43 : vector<8xf32> to vector<8x1xf32>
    %45 = vector.broadcast %44 : vector<8x1xf32> to vector<8x8xf32>
    %46 = arith.subf %42, %45 : vector<8x8xf32>
    %47 = math.exp %46 : vector<8x8xf32>
    %cst_18 = arith.constant dense<0.000000e+00> : vector<8xf32>
    %48 = vector.multi_reduction <add>, %47, %cst_18 [1] : vector<8x8xf32> to vector<8xf32>
    %49 = vector.shape_cast %48 : vector<8xf32> to vector<8x1xf32>
    %50 = tpu.reciprocal %49 {approx = true} : vector<8x1xf32> -> vector<8x1xf32>
    %51 = vector.broadcast %50 : vector<8x1xf32> to vector<8x8xf32>
    %52 = arith.mulf %47, %51 : vector<8x8xf32>
    %53 = arith.truncf %52 : vector<8x8xf32> to vector<8x8xbf16>
    %cst_19 = arith.constant dense<0.000000e+00> : vector<8x16xf32>
    %54 = tpu.matmul %53, %40, %cst_19 {dimension_numbers = #tpu.dot_dimension_numbers<[1], [0], [0], [1], [0, 0, 1, 1], [], []>} : vector<8x8xbf16>, vector<8x16xbf16>, vector<8x16xf32> -> vector<8x16xf32>
    %c0_20 = arith.constant 0 : index
    %c16 = arith.constant 16 : index
    %55 = vector.load %arg11[%c0_20, %c16] : memref<8x32xf32, #tpu.memory_space<vmem>>, vector<8x16xf32>
    tpu.vector_store %arg11[%c0_20, %c16], %54 {strides = array<i32>} : memref<8x32xf32, #tpu.memory_space<vmem>>, vector<8x16xf32>,
    %c0_21 = arith.constant 0 : index
    %c0_22 = arith.constant 0 : index
    %56 = vector.load %arg11[%c0_21, %c0_22] : memref<8x32xf32, #tpu.memory_space<vmem>>, vector<8x32xf32>
    %57 = arith.truncf %56 : vector<8x32xf32> to vector<8x32xbf16>
    %c0_23 = arith.constant 0 : index
    %c0_24 = arith.constant 0 : index
    %58 = vector.load %arg5[%c0_23, %c0_24] : memref<32x32xbf16, #tpu.memory_space<vmem>>, vector<32x32xbf16>
    %cst_25 = arith.constant dense<0.000000e+00> : vector<8x32xf32>
    %59 = tpu.matmul %57, %58, %cst_25 {dimension_numbers = #tpu.dot_dimension_numbers<[1], [0], [0], [1], [0, 0, 1, 1], [], []>} : vector<8x32xbf16>, vector<32x32xbf16>, vector<8x32xf32> -> vector<8x32xf32>
    %c0_26 = arith.constant 0 : index
    %c0_27 = arith.constant 0 : index
    %60 = vector.load %arg9[%c0_26, %c0_27] : memref<6x32xf32, #tpu.memory_space<vmem>>, vector<1x32xf32>
    %61 = vector.broadcast %60 : vector<1x32xf32> to vector<8x32xf32>
    %62 = arith.addf %59, %61 : vector<8x32xf32>
    %63 = arith.addf %1, %62 : vector<8x32xf32>
    %c1 = arith.constant 1 : index
    %c0_28 = arith.constant 0 : index
    %64 = vector.load %arg9[%c1, %c0_28] : memref<6x32xf32, #tpu.memory_space<vmem>>, vector<1x32xf32>
    %c2 = arith.constant 2 : index
    %c0_29 = arith.constant 0 : index
    %65 = vector.load %arg9[%c2, %c0_29] : memref<6x32xf32, #tpu.memory_space<vmem>>, vector<1x32xf32>
    %cst_30 = arith.constant dense<0.000000e+00> : vector<8xf32>
    %66 = vector.multi_reduction <add>, %63, %cst_30 [1] : vector<8x32xf32> to vector<8xf32>
    %67 = vector.shape_cast %66 : vector<8xf32> to vector<8x1xf32>
    %cst_31 = arith.constant 3.200000e+01 : f32
    %68 = vector.broadcast %cst_31 : f32 to vector<8x1xf32>
    %69 = arith.divf %67, %68 : vector<8x1xf32>
    %70 = vector.broadcast %69 : vector<8x1xf32> to vector<8x32xf32>
    %71 = arith.subf %63, %70 : vector<8x32xf32>
    %72 = arith.mulf %71, %71 : vector<8x32xf32>
    %cst_32 = arith.constant dense<0.000000e+00> : vector<8xf32>
    %73 = vector.multi_reduction <add>, %72, %cst_32 [1] : vector<8x32xf32> to vector<8xf32>
    %74 = vector.shape_cast %73 : vector<8xf32> to vector<8x1xf32>
    %cst_33 = arith.constant 3.200000e+01 : f32
    %75 = vector.broadcast %cst_33 : f32 to vector<8x1xf32>
    %76 = arith.divf %74, %75 : vector<8x1xf32>
    %77 = vector.broadcast %69 : vector<8x1xf32> to vector<8x32xf32>
    %78 = arith.subf %63, %77 : vector<8x32xf32>
    %cst_34 = arith.constant 9.99999996E-13 : f32
    %79 = vector.broadcast %cst_34 : f32 to vector<8x1xf32>
    %80 = arith.addf %76, %79 : vector<8x1xf32>
    %81 = math.rsqrt %80 : vector<8x1xf32>
    %82 = vector.broadcast %81 : vector<8x1xf32> to vector<8x32xf32>
    %83 = arith.mulf %78, %82 : vector<8x32xf32>
    %84 = vector.broadcast %64 : vector<1x32xf32> to vector<8x32xf32>
    %85 = arith.mulf %83, %84 : vector<8x32xf32>
    %86 = vector.broadcast %65 : vector<1x32xf32> to vector<8x32xf32>
    %87 = arith.addf %85, %86 : vector<8x32xf32>
    %88 = arith.truncf %87 : vector<8x32xf32> to vector<8x32xbf16>
    %c0_35 = arith.constant 0 : index
    %c0_36 = arith.constant 0 : index
    %89 = vector.load %arg6[%c0_35, %c0_36] : memref<32x64xbf16, #tpu.memory_space<vmem>>, vector<32x64xbf16>
    %cst_37 = arith.constant dense<0.000000e+00> : vector<8x64xf32>
    %90 = tpu.matmul %88, %89, %cst_37 {dimension_numbers = #tpu.dot_dimension_numbers<[1], [0], [0], [1], [0, 0, 1, 1], [], []>} : vector<8x32xbf16>, vector<32x64xbf16>, vector<8x64xf32> -> vector<8x64xf32>
    %c0_38 = arith.constant 0 : index
    %c0_39 = arith.constant 0 : index
    %91 = vector.load %arg7[%c0_38, %c0_39] : memref<1x64xf32, #tpu.memory_space<vmem>>, vector<1x64xf32>
    %92 = vector.broadcast %91 : vector<1x64xf32> to vector<8x64xf32>
    %93 = arith.addf %90, %92 : vector<8x64xf32>
    %94 = arith.mulf %93, %93 : vector<8x64xf32>
    %95 = arith.mulf %93, %94 : vector<8x64xf32>
    %cst_40 = arith.constant 4.471500e-02 : f32
    %96 = vector.broadcast %cst_40 : f32 to vector<8x64xf32>
    %97 = arith.mulf %96, %95 : vector<8x64xf32>
    %98 = arith.addf %93, %97 : vector<8x64xf32>
    %cst_41 = arith.constant 0.797884583 : f32
    %99 = vector.broadcast %cst_41 : f32 to vector<8x64xf32>
    %100 = arith.mulf %99, %98 : vector<8x64xf32>
    %101 = math.tanh %100 : vector<8x64xf32>
    %cst_42 = arith.constant 1.000000e+00 : f32
    %102 = vector.broadcast %cst_42 : f32 to vector<8x64xf32>
    %103 = arith.addf %102, %101 : vector<8x64xf32>
    %cst_43 = arith.constant 5.000000e-01 : f32
    %104 = vector.broadcast %cst_43 : f32 to vector<8x64xf32>
    %105 = arith.mulf %104, %103 : vector<8x64xf32>
    %106 = arith.mulf %93, %105 : vector<8x64xf32>
    %107 = arith.truncf %106 : vector<8x64xf32> to vector<8x64xbf16>
    %c0_44 = arith.constant 0 : index
    %c0_45 = arith.constant 0 : index
    %108 = vector.load %arg8[%c0_44, %c0_45] : memref<64x32xbf16, #tpu.memory_space<vmem>>, vector<64x32xbf16>
    %cst_46 = arith.constant dense<0.000000e+00> : vector<8x32xf32>
    %109 = tpu.matmul %107, %108, %cst_46 {dimension_numbers = #tpu.dot_dimension_numbers<[1], [0], [0], [1], [0, 0, 1, 1], [], []>} : vector<8x64xbf16>, vector<64x32xbf16>, vector<8x32xf32> -> vector<8x32xf32>
    %c3 = arith.constant 3 : index
    %c0_47 = arith.constant 0 : index
    %110 = vector.load %arg9[%c3, %c0_47] : memref<6x32xf32, #tpu.memory_space<vmem>>, vector<1x32xf32>
    %111 = vector.broadcast %110 : vector<1x32xf32> to vector<8x32xf32>
    %112 = arith.addf %109, %111 : vector<8x32xf32>
    %113 = arith.addf %87, %112 : vector<8x32xf32>
    %c4 = arith.constant 4 : index
    %c0_48 = arith.constant 0 : index
    %114 = vector.load %arg9[%c4, %c0_48] : memref<6x32xf32, #tpu.memory_space<vmem>>, vector<1x32xf32>
    %c5 = arith.constant 5 : index
    %c0_49 = arith.constant 0 : index
    %115 = vector.load %arg9[%c5, %c0_49] : memref<6x32xf32, #tpu.memory_space<vmem>>, vector<1x32xf32>
    %cst_50 = arith.constant dense<0.000000e+00> : vector<8xf32>
    %116 = vector.multi_reduction <add>, %113, %cst_50 [1] : vector<8x32xf32> to vector<8xf32>
    %117 = vector.shape_cast %116 : vector<8xf32> to vector<8x1xf32>
    %cst_51 = arith.constant 3.200000e+01 : f32
    %118 = vector.broadcast %cst_51 : f32 to vector<8x1xf32>
    %119 = arith.divf %117, %118 : vector<8x1xf32>
    %120 = vector.broadcast %119 : vector<8x1xf32> to vector<8x32xf32>
    %121 = arith.subf %113, %120 : vector<8x32xf32>
    %122 = arith.mulf %121, %121 : vector<8x32xf32>
    %cst_52 = arith.constant dense<0.000000e+00> : vector<8xf32>
    %123 = vector.multi_reduction <add>, %122, %cst_52 [1] : vector<8x32xf32> to vector<8xf32>
    %124 = vector.shape_cast %123 : vector<8xf32> to vector<8x1xf32>
    %cst_53 = arith.constant 3.200000e+01 : f32
    %125 = vector.broadcast %cst_53 : f32 to vector<8x1xf32>
    %126 = arith.divf %124, %125 : vector<8x1xf32>
    %127 = vector.broadcast %119 : vector<8x1xf32> to vector<8x32xf32>
    %128 = arith.subf %113, %127 : vector<8x32xf32>
    %cst_54 = arith.constant 9.99999996E-13 : f32
    %129 = vector.broadcast %cst_54 : f32 to vector<8x1xf32>
    %130 = arith.addf %126, %129 : vector<8x1xf32>
    %131 = math.rsqrt %130 : vector<8x1xf32>
    %132 = vector.broadcast %131 : vector<8x1xf32> to vector<8x32xf32>
    %133 = arith.mulf %128, %132 : vector<8x32xf32>
    %134 = vector.broadcast %114 : vector<1x32xf32> to vector<8x32xf32>
    %135 = arith.mulf %133, %134 : vector<8x32xf32>
    %136 = vector.broadcast %115 : vector<1x32xf32> to vector<8x32xf32>
    %137 = arith.addf %135, %136 : vector<8x32xf32>
    %c0_55 = arith.constant 0 : index
    %c0_56 = arith.constant 0 : index
    %c0_57 = arith.constant 0 : index
    %138 = vector.load %arg10[%c0_55, %c0_56, %c0_57] : memref<1x8x32xf32, #tpu.memory_space<vmem>>, vector<1x8x32xf32>
    %139 = vector.shape_cast %138 : vector<1x8x32xf32> to vector<8x32xf32>
    %140 = vector.shape_cast %137 : vector<8x32xf32> to vector<1x8x32xf32>
    tpu.vector_store %arg10[%c0_55, %c0_56, %c0_57], %140 {strides = array<i32>} : memref<1x8x32xf32, #tpu.memory_space<vmem>>, vector<1x8x32xf32>,
    return
  }
  func.func @transform_0(%arg0: i32) -> (i32, i32, i32) {
    %c0_i32 = arith.constant 0 : i32
    %c0_i32_0 = arith.constant 0 : i32
    %c0_i32_1 = arith.constant 0 : i32
    return %arg0, %c0_i32, %c0_i32_0 : i32, i32, i32
  }
  func.func @transform_1(%arg0: i32) -> (i32, i32, i32) {
    %c0_i32 = arith.constant 0 : i32
    %c0_i32_0 = arith.constant 0 : i32
    %c0_i32_1 = arith.constant 0 : i32
    return %arg0, %c0_i32, %c0_i32_0 : i32, i32, i32
  }
  func.func @transform_2(%arg0: i32) -> (i32, i32) {
    %c0_i32 = arith.constant 0 : i32
    %c0_i32_0 = arith.constant 0 : i32
    %c0_i32_1 = arith.constant 0 : i32
    return %c0_i32, %c0_i32_0 : i32, i32
  }
  func.func @transform_3(%arg0: i32) -> (i32, i32) {
    %c0_i32 = arith.constant 0 : i32
    %c0_i32_0 = arith.constant 0 : i32
    %c0_i32_1 = arith.constant 0 : i32
    return %c0_i32, %c0_i32_0 : i32, i32
  }
  func.func @transform_4(%arg0: i32) -> (i32, i32) {
    %c0_i32 = arith.constant 0 : i32
    %c0_i32_0 = arith.constant 0 : i32
    %c0_i32_1 = arith.constant 0 : i32
    return %c0_i32, %c0_i32_0 : i32, i32
  }
  func.func @transform_5(%arg0: i32) -> (i32, i32) {
    %c0_i32 = arith.constant 0 : i32
    %c0_i32_0 = arith.constant 0 : i32
    %c0_i32_1 = arith.constant 0 : i32
    return %c0_i32, %c0_i32_0 : i32, i32
  }
  func.func @transform_6(%arg0: i32) -> (i32, i32) {
    %c0_i32 = arith.constant 0 : i32
    %c0_i32_0 = arith.constant 0 : i32
    %c0_i32_1 = arith.constant 0 : i32
    return %c0_i32, %c0_i32_0 : i32, i32
  }
  func.func @transform_7(%arg0: i32) -> (i32, i32) {
    %c0_i32 = arith.constant 0 : i32
    %c0_i32_0 = arith.constant 0 : i32
    %c0_i32_1 = arith.constant 0 : i32
    return %c0_i32, %c0_i32_0 : i32, i32
  }
  func.func @transform_8(%arg0: i32) -> (i32, i32) {
    %c0_i32 = arith.constant 0 : i32
    %c0_i32_0 = arith.constant 0 : i32
    %c0_i32_1 = arith.constant 0 : i32
    return %c0_i32, %c0_i32_0 : i32, i32
  }
  func.func @transform_9(%arg0: i32) -> (i32, i32, i32) {
    %c0_i32 = arith.constant 0 : i32
    %c0_i32_0 = arith.constant 0 : i32
    %c0_i32_1 = arith.constant 0 : i32
    return %arg0, %c0_i32, %c0_i32_0 : i32, i32, i32
  }
}

</mosaic_0001>

<llo_original>
// kernel: tpu_custom_call.1
$region0: #{tpu_custom_call.1}
  #allocation0 [shape = 'u32[]', space=smem, size = 0x4, offset = 0x4, fixed_abs, tag = 'smem constant byte address 0x4 - core index']
  #allocation1 [shape = 'u32[144,128]{1,0:T(1,128)}', space=vmem, size = 0x12000, scoped, tag = 'internal scratch']
  #allocation2 [shape = 'f32[8,32]{1,0:T(8,128)}', space=vmem, size = 0x1000, scoped, tag = 'scratch operand']
  %s0 = inlined_call_operand.vmem [shape: f32[2,8,32], index: 0, kind: input, shape index: {}]
  %s1 = inlined_call_operand.vmem [shape: f32[2,1,8], index: 1, kind: input, shape index: {}]
  %s2 = inlined_call_operand.vmem [shape: bf16[32,96], index: 2, kind: input, shape index: {}]
  %s3 = inlined_call_operand.hbm [shape: f32[1,96], index: 3, kind: input, shape index: {}]
  %s4 = inlined_call_operand.vmem [shape: bf16[32,32], index: 4, kind: input, shape index: {}]
  %s5 = inlined_call_operand.hbm [shape: bf16[32,64], index: 5, kind: input, shape index: {}]
  %s6 = inlined_call_operand.hbm [shape: f32[1,64], index: 6, kind: input, shape index: {}]
  %s7 = inlined_call_operand.vmem [shape: bf16[64,32], index: 7, kind: input, shape index: {}]
  %s8 = inlined_call_operand.vmem [shape: f32[6,32], index: 8, kind: input, shape index: {}]
  %s9 = inlined_call_operand.hbm [shape: f32[2,8,32], index: 9, kind: output, shape index: {}]
  %s10 = sld [smem:[#allocation0]]
  $region81: #{tpu_custom_call.1} parent=0
    _
  %s12 = ssub.s32 1, %s10
  %s13 = scalar_select 0, %s12, %s10
  $region1: #{tpu_custom_call.1} parent=0
    #allocation3 [shape = 'u8[512]{0}', space=vmem, size = 0x400, scoped, tag = 'input window, operand 3, single buffered']
    #allocation4 [shape = 's32[2]{0}', space=sflag, size = 0x8, scoped, tag = 'scoped memory for tpu_custom_call.1']
    #allocation5 [shape = 's32[2]{0}', space=sflag, size = 0x8, scoped, tag = 'scoped memory for tpu_custom_call.1']
    #allocation6 [shape = 'u8[8192]{0}', space=vmem, size = 0x2000, scoped, tag = 'input window, operand 5, single buffered']
    #allocation7 [shape = 's32[1]{0}', space=sflag, size = 0x4, scoped, tag = 'scoped memory for tpu_custom_call.1']
    #allocation8 [shape = 'u8[512]{0}', space=vmem, size = 0x400, scoped, tag = 'input window, operand 6, single buffered']
    #allocation9 [shape = 'u8[8192]{0}', space=vmem, size = 0x2000, scoped, tag = 'output window, operand 0']
    %14 = vsyncpa [#allocation4], 0
    %15 = vsyncpa [#allocation7], 0
    %16 = vsyncpa [#allocation5], 0
    %s17 = scalar_lea.sflag [#allocation5], 1
    %18 = vsyncpa %s17, 0
    loop: start=0, step=1, limit=4
    $region2: #{tpu_custom_call.1} parent=1 // loop_pre_header
      _
    $region3: #{tpu_custom_call.1} parent=1 // loop_header
      %s20 = sphi 0, %s24
      %p21 = scmp.ge.s32.totalorder %s20, 4
      %s30 = sphi 0, %s32
      %s33 = sphi 0, %s30
      %s34 = sphi 0, %s33
      %s50 = sphi 0, %s34
      %s56 = sphi 0, %s58
      %s59 = sphi 0, %s56
      %s60 = sphi 0, %s59
      %s76 = sphi 0, %s60
      %s80 = sphi 0, %s80
      %s82 = sphi 0, %s80
      %s83 = sphi 0, %s82
      %s97 = sphi 0, %s83
      %s101 = sphi 0, %s101
      %s103 = sphi 0, %s101
      %s104 = sphi 0, %s103
      %s118 = sphi 0, %s104
      %s122 = sphi 0, %s122
      %s124 = sphi 0, %s122
      %s125 = sphi 0, %s124
      %s139 = sphi 0, %s125
      %s143 = sphi 0, %s143
      %s145 = sphi 0, %s143
      %s146 = sphi 0, %s145
      %s160 = sphi 0, %s146
      %s164 = sphi 0, %s164
      %s166 = sphi 0, %s164
      %s167 = sphi 0, %s166
      %s181 = sphi 0, %s167
      %s185 = sphi 0, %s185
      %s187 = sphi 0, %s185
      %s188 = sphi 0, %s187
      %s202 = sphi 0, %s188
      %s206 = sphi 0, %s206
      %s208 = sphi 0, %s206
      %s209 = sphi 0, %s208
      %s223 = sphi 0, %s209
      %s229 = sphi 0, %s231
      %s232 = sphi 0, %s229
      %s233 = sphi 0, %s232
      %s249 = sphi 0, %s233
    $region4: #{tpu_custom_call.1} parent=1 // loop_header_branch
      %23 = sbr.rel (%p21) target = $region8
    $region5: #{tpu_custom_call.1} parent=1 // loop_body
      %s25 = ssub.s32 %s20, 1
      %s26 = ssub.s32 %s20, 2
      %s27 = sadd.s32 %s20, 1
      %s28 = ssub.s32 %s20, %s27
      %p29 = scmp.eq.s32.totalorder %s28, 0
      %s31 = sadd.s32 %s30, 1
      %s32 = scalar_select %p29, %s30, %s31
      %p35 = pneg %p29
      %p36 = scmp.eq.s32.totalorder %s20, 1
      %p37 = por %p35, %p36
      %p38 = scmp.ne.s32.totalorder %s30, %s33
      %p39 = scmp.eq.s32.totalorder %s20, 0
      %p40 = por %p38, %p39
      %p41 = scmp.ne.s32.totalorder %s30, %s33
      %p42 = scmp.eq.s32.totalorder %s25, 1
      %p43 = por %p41, %p42
      %p44 = scmp.ne.s32.totalorder %s33, %s34
      %p45 = scmp.eq.s32.totalorder %s25, 0
      %p46 = por %p44, %p45
      %p47 = scmp.ne.s32.totalorder %s33, %s34
      %p48 = scmp.eq.s32.totalorder %s26, 1
      %p49 = por %p47, %p48
      %p51 = scmp.ne.s32.totalorder %s34, %s50
      %p52 = scmp.eq.s32.totalorder %s26, 0
      %p53 = por %p51, %p52
      %s54 = ssub.s32 %s20, %s27
      %p55 = scmp.eq.s32.totalorder %s54, 0
      %s57 = sadd.s32 %s56, 1
      %s58 = scalar_select %p55, %s56, %s57
      %p61 = pneg %p55
      %p62 = scmp.eq.s32.totalorder %s20, 1
      %p63 = por %p61, %p62
      %p64 = scmp.ne.s32.totalorder %s56, %s59
      %p65 = scmp.eq.s32.totalorder %s20, 0
      %p66 = por %p64, %p65
      %p67 = scmp.ne.s32.totalorder %s56, %s59
      %p68 = scmp.eq.s32.totalorder %s25, 1
      %p69 = por %p67, %p68
      %p70 = scmp.ne.s32.totalorder %s59, %s60
      %p71 = scmp.eq.s32.totalorder %s25, 0
      %p72 = por %p70, %p71
      %p73 = scmp.ne.s32.totalorder %s59, %s60
      %p74 = scmp.eq.s32.totalorder %s26, 1
      %p75 = por %p73, %p74
      %p77 = scmp.ne.s32.totalorder %s60, %s76
      %p78 = scmp.eq.s32.totalorder %s26, 0
      %p79 = por %p77, %p78
      %s81 = sadd.s32 %s80, 1
      %p84 = scmp.eq.s32.totalorder %s20, 1
      %p85 = scmp.ne.s32.totalorder %s80, %s82
      %p86 = scmp.eq.s32.totalorder %s20, 0
      %p87 = por %p85, %p86
      %p88 = scmp.ne.s32.totalorder %s80, %s82
      %p89 = scmp.eq.s32.totalorder %s25, 1
      %p90 = por %p88, %p89
      %p91 = scmp.ne.s32.totalorder %s82, %s83
      %p92 = scmp.eq.s32.totalorder %s25, 0
      %p93 = por %p91, %p92
      %p94 = scmp.ne.s32.totalorder %s82, %s83
      %p95 = scmp.eq.s32.totalorder %s26, 1
      %p96 = por %p94, %p95
      %p98 = scmp.ne.s32.totalorder %s83, %s97
      %p99 = scmp.eq.s32.totalorder %s26, 0
      %p100 = por %p98, %p99
      %s102 = sadd.s32 %s101, 1
      %p105 = scmp.eq.s32.totalorder %s20, 1
      %p106 = scmp.ne.s32.totalorder %s101, %s103
      %p107 = scmp.eq.s32.totalorder %s20, 0
      %p108 = por %p106, %p107
      %p109 = scmp.ne.s32.totalorder %s101, %s103
      %p110 = scmp.eq.s32.totalorder %s25, 1
      %p111 = por %p109, %p110
      %p112 = scmp.ne.s32.totalorder %s103, %s104
      %p113 = scmp.eq.s32.totalorder %s25, 0
      %p114 = por %p112, %p113
      %p115 = scmp.ne.s32.totalorder %s103, %s104
      %p116 = scmp.eq.s32.totalorder %s26, 1
      %p117 = por %p115, %p116
      %p119 = scmp.ne.s32.totalorder %s104, %s118
      %p120 = scmp.eq.s32.totalorder %s26, 0
      %p121 = por %p119, %p120
      %s123 = sadd.s32 %s122, 1
      %p126 = scmp.eq.s32.totalorder %s20, 1
      %p127 = scmp.ne.s32.totalorder %s122, %s124
      %p128 = scmp.eq.s32.totalorder %s20, 0
      %p129 = por %p127, %p128
      %p130 = scmp.ne.s32.totalorder %s122, %s124
      %p131 = scmp.eq.s32.totalorder %s25, 1
      %p132 = por %p130, %p131
      %p133 = scmp.ne.s32.totalorder %s124, %s125
      %p134 = scmp.eq.s32.totalorder %s25, 0
      %p135 = por %p133, %p134
      %p136 = scmp.ne.s32.totalorder %s124, %s125
      %p137 = scmp.eq.s32.totalorder %s26, 1
      %p138 = por %p136, %p137
      %p140 = scmp.ne.s32.totalorder %s125, %s139
      %p141 = scmp.eq.s32.totalorder %s26, 0
      %p142 = por %p140, %p141
      %s144 = sadd.s32 %s143, 1
      %p147 = scmp.eq.s32.totalorder %s20, 1
      %p148 = scmp.ne.s32.totalorder %s143, %s145
      %p149 = scmp.eq.s32.totalorder %s20, 0
      %p150 = por %p148, %p149
      %p151 = scmp.ne.s32.totalorder %s143, %s145
      %p152 = scmp.eq.s32.totalorder %s25, 1
      %p153 = por %p151, %p152
      %p154 = scmp.ne.s32.totalorder %s145, %s146
      %p155 = scmp.eq.s32.totalorder %s25, 0
      %p156 = por %p154, %p155
      %p157 = scmp.ne.s32.totalorder %s145, %s146
      %p158 = scmp.eq.s32.totalorder %s26, 1
      %p159 = por %p157, %p158
      %p161 = scmp.ne.s32.totalorder %s146, %s160
      %p162 = scmp.eq.s32.totalorder %s26, 0
      %p163 = por %p161, %p162
      %s165 = sadd.s32 %s164, 1
      %p168 = scmp.eq.s32.totalorder %s20, 1
      %p169 = scmp.ne.s32.totalorder %s164, %s166
      %p170 = scmp.eq.s32.totalorder %s20, 0
      %p171 = por %p169, %p170
      %p172 = scmp.ne.s32.totalorder %s164, %s166
      %p173 = scmp.eq.s32.totalorder %s25, 1
      %p174 = por %p172, %p173
      %p175 = scmp.ne.s32.totalorder %s166, %s167
      %p176 = scmp.eq.s32.totalorder %s25, 0
      %p177 = por %p175, %p176
      %p178 = scmp.ne.s32.totalorder %s166, %s167
      %p179 = scmp.eq.s32.totalorder %s26, 1
      %p180 = por %p178, %p179
      %p182 = scmp.ne.s32.totalorder %s167, %s181
      %p183 = scmp.eq.s32.totalorder %s26, 0
      %p184 = por %p182, %p183
      %s186 = sadd.s32 %s185, 1
      %p189 = scmp.eq.s32.totalorder %s20, 1
      %p190 = scmp.ne.s32.totalorder %s185, %s187
      %p191 = scmp.eq.s32.totalorder %s20, 0
      %p192 = por %p190, %p191
      %p193 = scmp.ne.s32.totalorder %s185, %s187
      %p194 = scmp.eq.s32.totalorder %s25, 1
      %p195 = por %p193, %p194
      %p196 = scmp.ne.s32.totalorder %s187, %s188
      %p197 = scmp.eq.s32.totalorder %s25, 0
      %p198 = por %p196, %p197
      %p199 = scmp.ne.s32.totalorder %s187, %s188
      %p200 = scmp.eq.s32.totalorder %s26, 1
      %p201 = por %p199, %p200
      %p203 = scmp.ne.s32.totalorder %s188, %s202
      %p204 = scmp.eq.s32.totalorder %s26, 0
      %p205 = por %p203, %p204
      %s207 = sadd.s32 %s206, 1
      %p210 = scmp.eq.s32.totalorder %s20, 1
      %p211 = scmp.ne.s32.totalorder %s206, %s208
      %p212 = scmp.eq.s32.totalorder %s20, 0
      %p213 = por %p211, %p212
      %p214 = scmp.ne.s32.totalorder %s206, %s208
      %p215 = scmp.eq.s32.totalorder %s25, 1
      %p216 = por %p214, %p215
      %p217 = scmp.ne.s32.totalorder %s208, %s209
      %p218 = scmp.eq.s32.totalorder %s25, 0
      %p219 = por %p217, %p218
      %p220 = scmp.ne.s32.totalorder %s208, %s209
      %p221 = scmp.eq.s32.totalorder %s26, 1
      %p222 = por %p220, %p221
      %p224 = scmp.ne.s32.totalorder %s209, %s223
      %p225 = scmp.eq.s32.totalorder %s26, 0
      %p226 = por %p224, %p225
      %s227 = ssub.s32 %s20, %s27
      %p228 = scmp.eq.s32.totalorder %s227, 0
      %s230 = sadd.s32 %s229, 1
      %s231 = scalar_select %p228, %s229, %s230
      %p234 = pneg %p228
      %p235 = scmp.eq.s32.totalorder %s20, 1
      %p236 = por %p234, %p235
      %p237 = scmp.ne.s32.totalorder %s229, %s232
      %p238 = scmp.eq.s32.totalorder %s20, 0
      %p239 = por %p237, %p238
      %p240 = scmp.ne.s32.totalorder %s229, %s232
      %p241 = scmp.eq.s32.totalorder %s25, 1
      %p242 = por %p240, %p241
      %p243 = scmp.ne.s32.totalorder %s232, %s233
      %p244 = scmp.eq.s32.totalorder %s25, 0
      %p245 = por %p243, %p244
      %p246 = scmp.ne.s32.totalorder %s232, %s233
      %p247 = scmp.eq.s32.totalorder %s26, 1
      %p248 = por %p246, %p247
      %p250 = scmp.ne.s32.totalorder %s233, %s249
      %p251 = scmp.eq.s32.totalorder %s26, 0
      %p252 = por %p250, %p251
      %p253 = scmp.le.s32.totalorder 1, %s20
      %p254 = scmp.lt.s32.totalorder %s20, 3
      %p255 = pnand %p253, %p254
      %p256 = pneg %p255
      // Predicated region
      $region9: #{tpu_custom_call.1} parent=5 // pred_check
        _
      $region10: #{tpu_custom_call.1} parent=5 // pred_check_branch
        %258 = sbr.rel (%p255) target = $region12
      $region11: #{tpu_custom_call.1} parent=5 // pred_region
        %s259 = ssub.s32 %s20, 1
        // Predicated region
        $region13: #{tpu_custom_call.1} parent=11 // pred_check
          %p260 = pneg %p93
        $region14: #{tpu_custom_call.1} parent=11 // pred_check_branch
          %262 = sbr.rel (%p260) target = $region16
        $region15: #{tpu_custom_call.1} parent=11 // pred_region
          _
        $region16: #{tpu_custom_call.1} parent=11 // pred_fallthru
          _
        // Predicated region
        $region17: #{tpu_custom_call.1} parent=11 // pred_check
          %p263 = pneg %p114
        $region18: #{tpu_custom_call.1} parent=11 // pred_check_branch
          %265 = sbr.rel (%p263) target = $region20
        $region19: #{tpu_custom_call.1} parent=11 // pred_region
          %s267 = ssub.s32 16, 16
          %268 = vsyncadd [#allocation4], %s267
          %s270 = sshll.u32 [#allocation3], 4
          %s271 = int_to_ptr.vmem [resolvable:$true] %s270
          %273 = dma.hbm_to_vmem [thread:$0]  %s3, 16, %s271, [#allocation4]
        $region20: #{tpu_custom_call.1} parent=11 // pred_fallthru
          _
        // Predicated region
        $region21: #{tpu_custom_call.1} parent=11 // pred_check
          %p274 = pneg %p135
        $region22: #{tpu_custom_call.1} parent=11 // pred_check_branch
          %276 = sbr.rel (%p274) target = $region24
        $region23: #{tpu_custom_call.1} parent=11 // pred_region
          _
        $region24: #{tpu_custom_call.1} parent=11 // pred_fallthru
          _
        // Predicated region
        $region25: #{tpu_custom_call.1} parent=11 // pred_check
          %p277 = pneg %p156
        $region26: #{tpu_custom_call.1} parent=11 // pred_check_branch
          %279 = sbr.rel (%p277) target = $region28
        $region27: #{tpu_custom_call.1} parent=11 // pred_region
          %s281 = ssub.s32 256, 256
          %282 = vsyncadd [#allocation7], %s281
          %s283 = sshll.u32 [#allocation6], 4
          %s284 = int_to_ptr.vmem [resolvable:$true] %s283
          %289 = dma.hbm_to_vmem [thread:$0]  %s5, 256, %s284, [#allocation7], 64, 64, 4
        $region28: #{tpu_custom_call.1} parent=11 // pred_fallthru
          _
        // Predicated region
        $region29: #{tpu_custom_call.1} parent=11 // pred_check
          %p290 = pneg %p177
        $region30: #{tpu_custom_call.1} parent=11 // pred_check_branch
          %292 = sbr.rel (%p290) target = $region32
        $region31: #{tpu_custom_call.1} parent=11 // pred_region
          %s294 = ssub.s32 16, 16
          %295 = vsyncadd [#allocation7], %s294
          %s297 = sshll.u32 [#allocation8], 4
          %s298 = int_to_ptr.vmem [resolvable:$true] %s297
          %300 = dma.hbm_to_vmem [thread:$0]  %s6, 16, %s298, [#allocation7]
        $region32: #{tpu_custom_call.1} parent=11 // pred_fallthru
          _
        // Predicated region
        $region33: #{tpu_custom_call.1} parent=11 // pred_check
          %p301 = pneg %p198
        $region34: #{tpu_custom_call.1} parent=11 // pred_check_branch
          %303 = sbr.rel (%p301) target = $region36
        $region35: #{tpu_custom_call.1} parent=11 // pred_region
          _
        $region36: #{tpu_custom_call.1} parent=11 // pred_fallthru
          _
        // Predicated region
        $region37: #{tpu_custom_call.1} parent=11 // pred_check
          %p304 = pneg %p219
        $region38: #{tpu_custom_call.1} parent=11 // pred_check_branch
          %306 = sbr.rel (%p304) target = $region40
        $region39: #{tpu_custom_call.1} parent=11 // pred_region
          _
        $region40: #{tpu_custom_call.1} parent=11 // pred_fallthru
          _
      $region12: #{tpu_custom_call.1} parent=5 // pred_fallthru
        _
      %p307 = scmp.lt.s32.totalorder %s20, 2
      // Predicated region
      $region41: #{tpu_custom_call.1} parent=5 // pred_check
        %p308 = pneg %p307
      $region42: #{tpu_custom_call.1} parent=5 // pred_check_branch
        %310 = sbr.rel (%p308) target = $region44
      $region43: #{tpu_custom_call.1} parent=5 // pred_region
        // Predicated region
        $region45: #{tpu_custom_call.1} parent=43 // pred_check
          %p311 = pneg %p40
        $region46: #{tpu_custom_call.1} parent=43 // pred_check_branch
          %313 = sbr.rel (%p311) target = $region48
        $region47: #{tpu_custom_call.1} parent=43 // pred_region
          %p314 = scmp.lt.s32.totalorder %s20, 1
          %s315 = scalar_select %p314, %s20, 1
          %s316 = smul.addr %s315, 8
          %s317 = scalar_lea.vmem %s0, %s316
        $region48: #{tpu_custom_call.1} parent=43 // pred_fallthru
          _
        // Predicated region
        $region49: #{tpu_custom_call.1} parent=43 // pred_check
          %p318 = pneg %p66
        $region50: #{tpu_custom_call.1} parent=43 // pred_check_branch
          %320 = sbr.rel (%p318) target = $region52
        $region51: #{tpu_custom_call.1} parent=43 // pred_region
          %p321 = scmp.lt.s32.totalorder %s20, 1
          %s322 = scalar_select %p321, %s20, 1
          %s323 = scalar_lea.vmem %s1, %s322
        $region52: #{tpu_custom_call.1} parent=43 // pred_fallthru
          _
      $region44: #{tpu_custom_call.1} parent=5 // pred_fallthru
        _
      %p324 = scmp.le.s32.totalorder 1, %s20
      %p325 = scmp.lt.s32.totalorder %s20, 3
      %p326 = pnand %p324, %p325
      %p327 = pneg %p326
      // Predicated region
      $region53: #{tpu_custom_call.1} parent=5 // pred_check
        _
      $region54: #{tpu_custom_call.1} parent=5 // pred_check_branch
        %329 = sbr.rel (%p326) target = $region56
      $region55: #{tpu_custom_call.1} parent=5 // pred_region
        %s330 = ssub.s32 %s20, 1
        // Predicated region
        $region57: #{tpu_custom_call.1} parent=55 // pred_check
          %p331 = pneg %p114
        $region58: #{tpu_custom_call.1} parent=55 // pred_check_branch
          %333 = sbr.rel (%p331) target = $region60
        $region59: #{tpu_custom_call.1} parent=55 // pred_region
          %334 = dma.done [#allocation4], 16
        $region60: #{tpu_custom_call.1} parent=55 // pred_fallthru
          _
        // Predicated region
        $region61: #{tpu_custom_call.1} parent=55 // pred_check
          %p335 = pneg %p156
        $region62: #{tpu_custom_call.1} parent=55 // pred_check_branch
          %337 = sbr.rel (%p335) target = $region64
        $region63: #{tpu_custom_call.1} parent=55 // pred_region
          %338 = dma.done [#allocation7], 256
        $region64: #{tpu_custom_call.1} parent=55 // pred_fallthru
          _
        // Predicated region
        $region65: #{tpu_custom_call.1} parent=55 // pred_check
          %p339 = pneg %p177
        $region66: #{tpu_custom_call.1} parent=55 // pred_check_branch
          %341 = sbr.rel (%p339) target = $region68
        $region67: #{tpu_custom_call.1} parent=55 // pred_region
          %342 = dma.done [#allocation7], 16
        $region68: #{tpu_custom_call.1} parent=55 // pred_fallthru
          _
        %p343 = scmp.lt.s32.totalorder %s25, 1
        %s344 = scalar_select %p343, %s25, 1
        %s345 = smul.addr %s344, 8
        %s346 = scalar_lea.vmem %s0, %s345
        %p347 = pneg %p46
        %p348 = pneg %p43
        %p349 = scmp.lt.s32.totalorder %s25, 1
        %s350 = scalar_select %p349, %s25, 1
        %s351 = scalar_lea.vmem %s1, %s350
        %p352 = pneg %p72
        %p353 = pneg %p69
        %p354 = pneg %p93
        %p355 = pneg %p90
        %p356 = pneg %p114
        %p357 = pneg %p111
        %p358 = pneg %p135
        %p359 = pneg %p132
        %p360 = pneg %p156
        %p361 = pneg %p153
        %p362 = pneg %p177
        %p363 = pneg %p174
        %p364 = pneg %p198
        %p365 = pneg %p195
        %p366 = pneg %p219
        %p367 = pneg %p216
        %p368 = pneg %p245
        %p369 = pneg %p242
        %s370 = sand.u32 %s232, 1
        %s371 = scalar_lea.sflag [#allocation5], %s370
        %s372 = sand.u32 %s232, 1
        %s373 = smul.addr %s372, 8
        %s374 = scalar_lea.vmem [#allocation9], %s373
        %p375 = scmp.lt.s32.totalorder %s25, 1
        %s376 = scalar_select %p375, %s25, 1
        %s377 = smul.addr %s376, 8
        %s378 = scalar_lea.vmem %s0, %s377
        %p379 = scmp.lt.s32.totalorder %s25, 1
        %s380 = scalar_select %p379, %s25, 1
        %s381 = scalar_lea.vmem %s1, %s380
        %v383 = vld [vmem:[%s378] sm:$0xff]
        %v384 = vpack.c.bf16 %v383, %v383
        %v385 = vld [vmem:[%s381] sm:$0x1]
        %v387 = vlaneseq
        %v388 = vshrl.u32 %v387, 7
        %v389 = vsub.s32 0, %v388
        %v390 = vrot.slane %v385, %v389
        %v392 = vld [vmem:[%s2] sm:$0xf]
        %v393 = vld [vmem:[%s2 + $0x4] sm:$0xf]
        %v394 = vld [vmem:[%s2 + $0x8] sm:$0xf]
        %v395 = vld [vmem:[%s2 + $0xc] sm:$0xf]
        %v396 = vld [vmem:[#allocation3] sm:$0x1]
        %v398 = vlaneseq
        %v399 = vshrl.u32 %v398, 7
        %v400 = vsub.s32 0, %v399
        %v401 = vrot.slane %v396, %v400
        %v407 = vunpack.c.l.b16 %v392
        %v408 = vunpack.c.l.b16 %v393
        %v409 = vunpack.c.l.b16 %v394
        %v410 = vunpack.c.l.b16 %v395
        %v411 = vpack.c.b16 %v408, %v407
        %v412 = vpack.c.b16 %v410, %v409
        %vm415 = vcmask 261120
        %v417 = vsel %vm415, %v384, 0
        %419 = vmatprep.subr.bf16.mxu0 0
        %420 = vmatpush1.bf16.msra.mxu0 %v411
        %421 = vmatprep.subr.bf16.mxu0 0
        %422 = vmatpush1.bf16.msra.mxu0 %v412
        %423 = vmatprep.subr.bf16.mxu0 0
        %424 = vmatpush1.bf16.msra.mxu0 0
        %425 = vmatprep.subr.bf16.mxu0 0
        %426 = vmatpush1.bf16.msra.mxu0 0
        %427 = vmatprep.subr.bf16.mxu0 0
        %428 = vmatpush1.bf16.msra.mxu0 0
        %429 = vmatprep.subr.bf16.mxu0 0
        %430 = vmatpush1.bf16.msra.mxu0 0
        %431 = vmatprep.subr.bf16.mxu0 0
        %432 = vmatpush1.bf16.msra.mxu0 0
        %433 = vmatprep.subr.bf16.mxu0 0
        %434 = vmatpush1.bf16.msra.mxu0 0
        %435 = vmatprep.subr.bf16.mxu0 0
        %436 = vmatpush1.bf16.msra.mxu0 0
        %437 = vmatprep.subr.bf16.mxu0 0
        %438 = vmatpush1.bf16.msra.mxu0 0
        %439 = vmatprep.subr.bf16.mxu0 0
        %440 = vmatpush1.bf16.msra.mxu0 0
        %441 = vmatprep.subr.bf16.mxu0 0
        %442 = vmatpush1.bf16.msra.mxu0 0
        %443 = vmatprep.subr.bf16.mxu0 0
        %444 = vmatpush1.bf16.msra.mxu0 0
        %445 = vmatprep.subr.bf16.mxu0 0
        %446 = vmatpush1.bf16.msra.mxu0 0
        %447 = vmatprep.subr.bf16.mxu0 0
        %448 = vmatpush1.bf16.msra.mxu0 0
        %449 = vmatprep.subr.bf16.mxu0 0
        %450 = vmatpush1.bf16.msra.mxu0 0
        %451 = vmatprep.mubr.bf16.mxu0 0
        %452 = vmatmul.mubr.bf16.gmra.mrb[0].mxu0 %v417
        %v453 = vpop.f32.mrb[0].mxu0
        %v454 = vadd.f32 %v401, %v453
        %v455 = vpop.f32.mrb[0].mxu0
        %v456 = vpop.f32.mrb[0].mxu0
        %v457 = vpop.f32.mrb[0].mxu0
        %458 = vdwg.mxu0
        %v459 = vmul.f32 %v454, 0.25
        %v460 = vpack.c.bf16 %v459, %v459
        %v461 = vpack.c.bf16 %v454, %v454
        %463 = vrot.lane.b32.xlu0 %v461, 96
        %v464 = vpop.permute.xlu0 %463
        %vm465 = vcmask 130048
        %v467 = vsel %vm465, %v460, 0
        %v470 = vsel %vm465, %v464, 0
        %472 = vmatprep.subr.bf16.mxu0 0
        %473 = vmatpush1.bf16.xpose.msra.mxu0 %v470
        %474 = vmatprep.subr.bf16.mxu0 0
        %475 = vmatpush1.bf16.xpose.msra.mxu0 0
        %476 = vmatprep.subr.bf16.mxu0 0
        %477 = vmatpush1.bf16.xpose.msra.mxu0 0
        %478 = vmatprep.subr.bf16.mxu0 0
        %479 = vmatpush1.bf16.xpose.msra.mxu0 0
        %480 = vmatprep.subr.bf16.mxu0 0
        %481 = vmatpush1.bf16.xpose.msra.mxu0 0
        %482 = vmatprep.subr.bf16.mxu0 0
        %483 = vmatpush1.bf16.xpose.msra.mxu0 0
        %484 = vmatprep.subr.bf16.mxu0 0
        %485 = vmatpush1.bf16.xpose.msra.mxu0 0
        %486 = vmatprep.subr.bf16.mxu0 0
        %487 = vmatpush1.bf16.xpose.msra.mxu0 0
        %488 = vmatprep.subr.bf16.mxu0 0
        %489 = vmatpush1.bf16.xpose.msra.mxu0 0
        %490 = vmatprep.subr.bf16.mxu0 0
        %491 = vmatpush1.bf16.xpose.msra.mxu0 0
        %492 = vmatprep.subr.bf16.mxu0 0
        %493 = vmatpush1.bf16.xpose.msra.mxu0 0
        %494 = vmatprep.subr.bf16.mxu0 0
        %495 = vmatpush1.bf16.xpose.msra.mxu0 0
        %496 = vmatprep.subr.bf16.mxu0 0
        %497 = vmatpush1.bf16.xpose.msra.mxu0 0
        %498 = vmatprep.subr.bf16.mxu0 0
        %499 = vmatpush1.bf16.xpose.msra.mxu0 0
        %500 = vmatprep.subr.bf16.mxu0 0
        %501 = vmatpush1.bf16.xpose.msra.mxu0 0
        %502 = vmatprep.subr.bf16.mxu0 0
        %503 = vmatpush1.bf16.xpose.msra.mxu0 0
        %504 = vmatprep.mubr.bf16.mxu0 0
        %505 = vmatmul.mubr.bf16.gmra.mrb[0].mxu0 %v467
        %v506 = vpop.f32.mrb[0].mxu0
        %v507 = vadd.f32 %v390, %v506
        %v508 = vpop.f32.mrb[0].mxu0
        %v509 = vpop.f32.mrb[0].mxu0
        %v510 = vpop.f32.mrb[0].mxu0
        %511 = vdwg.mxu0
        %vm512 = vcmask 64512
        %v513 = vsel %vm512, %v507, -inf
        %514 = vmax.xlane.f32.xlu0 %v513
        %v515 = vpop.xlane.xlu0 %514
        %v516 = vsub.f32 %v507, %v515
        %v517 = vmul.f32 %v516, 1.442695
        %v518 = vpow.pop %v517
        %v519 = vsel %vm512, %v518, 0.0
        %520 = vadd.xlane.f32.xlu0 %v519
        %v521 = vpop.xlane.xlu0 %520
        %v522 = vrcp.pop %v521
        %v523 = vmul.f32 %v518, %v522
        %v524 = vpack.c.bf16 %v523, %v523
        %525 = vrot.lane.b32.xlu0 %v461, 64
        %v526 = vpop.permute.xlu0 %525
        %v528 = vsel %vm512, %v524, 0
        %vm530 = vcmask 1043456
        %v532 = vsel %vm530, %v526, 0
        %534 = vmatprep.subr.bf16.mxu0 0
        %535 = vmatpush1.bf16.msra.mxu0 %v532
        %536 = vmatprep.subr.bf16.mxu0 0
        %537 = vmatpush1.bf16.msra.mxu0 0
        %538 = vmatprep.subr.bf16.mxu0 0
        %539 = vmatpush1.bf16.msra.mxu0 0
        %540 = vmatprep.subr.bf16.mxu0 0
        %541 = vmatpush1.bf16.msra.mxu0 0
        %542 = vmatprep.subr.bf16.mxu0 0
        %543 = vmatpush1.bf16.msra.mxu0 0
        %544 = vmatprep.subr.bf16.mxu0 0
        %545 = vmatpush1.bf16.msra.mxu0 0
        %546 = vmatprep.subr.bf16.mxu0 0
        %547 = vmatpush1.bf16.msra.mxu0 0
        %548 = vmatprep.subr.bf16.mxu0 0
        %549 = vmatpush1.bf16.msra.mxu0 0
        %550 = vmatprep.subr.bf16.mxu0 0
        %551 = vmatpush1.bf16.msra.mxu0 0
        %552 = vmatprep.subr.bf16.mxu0 0
        %553 = vmatpush1.bf16.msra.mxu0 0
        %554 = vmatprep.subr.bf16.mxu0 0
        %555 = vmatpush1.bf16.msra.mxu0 0
        %556 = vmatprep.subr.bf16.mxu0 0
        %557 = vmatpush1.bf16.msra.mxu0 0
        %558 = vmatprep.subr.bf16.mxu0 0
        %559 = vmatpush1.bf16.msra.mxu0 0
        %560 = vmatprep.subr.bf16.mxu0 0
        %561 = vmatpush1.bf16.msra.mxu0 0
        %562 = vmatprep.subr.bf16.mxu0 0
        %563 = vmatpush1.bf16.msra.mxu0 0
        %564 = vmatprep.subr.bf16.mxu0 0
        %565 = vmatpush1.bf16.msra.mxu0 0
        %566 = vmatprep.mubr.bf16.mxu0 0
        %567 = vmatmul.mubr.bf16.gmra.mrb[0].mxu0 %v528
        %v568 = vpop.f32.mrb[0].mxu0
        %v569 = vadd.f32 0.0, %v568
        %v570 = vpop.f32.mrb[0].mxu0
        %v571 = vpop.f32.mrb[0].mxu0
        %v572 = vpop.f32.mrb[0].mxu0
        %573 = vdwg.mxu0
        %574 = vst.msk [vmem:[#allocation2] sm:$0xff] %vm465, %v569
        %576 = vrot.lane.b32.xlu0 %v460, 112
        %v577 = vpop.permute.xlu0 %576
        %578 = vrot.lane.b32.xlu0 %v461, 80
        %v579 = vpop.permute.xlu0 %578
        %v581 = vsel %vm465, %v577, 0
        %v584 = vsel %vm465, %v579, 0
        %586 = vmatprep.subr.bf16.mxu0 0
        %587 = vmatpush1.bf16.xpose.msra.mxu0 %v584
        %588 = vmatprep.subr.bf16.mxu0 0
        %589 = vmatpush1.bf16.xpose.msra.mxu0 0
        %590 = vmatprep.subr.bf16.mxu0 0
        %591 = vmatpush1.bf16.xpose.msra.mxu0 0
        %592 = vmatprep.subr.bf16.mxu0 0
        %593 = vmatpush1.bf16.xpose.msra.mxu0 0
        %594 = vmatprep.subr.bf16.mxu0 0
        %595 = vmatpush1.bf16.xpose.msra.mxu0 0
        %596 = vmatprep.subr.bf16.mxu0 0
        %597 = vmatpush1.bf16.xpose.msra.mxu0 0
        %598 = vmatprep.subr.bf16.mxu0 0
        %599 = vmatpush1.bf16.xpose.msra.mxu0 0
        %600 = vmatprep.subr.bf16.mxu0 0
        %601 = vmatpush1.bf16.xpose.msra.mxu0 0
        %602 = vmatprep.subr.bf16.mxu0 0
        %603 = vmatpush1.bf16.xpose.msra.mxu0 0
        %604 = vmatprep.subr.bf16.mxu0 0
        %605 = vmatpush1.bf16.xpose.msra.mxu0 0
        %606 = vmatprep.subr.bf16.mxu0 0
        %607 = vmatpush1.bf16.xpose.msra.mxu0 0
        %608 = vmatprep.subr.bf16.mxu0 0
        %609 = vmatpush1.bf16.xpose.msra.mxu0 0
        %610 = vmatprep.subr.bf16.mxu0 0
        %611 = vmatpush1.bf16.xpose.msra.mxu0 0
        %612 = vmatprep.subr.bf16.mxu0 0
        %613 = vmatpush1.bf16.xpose.msra.mxu0 0
        %614 = vmatprep.subr.bf16.mxu0 0
        %615 = vmatpush1.bf16.xpose.msra.mxu0 0
        %616 = vmatprep.subr.bf16.mxu0 0
        %617 = vmatpush1.bf16.xpose.msra.mxu0 0
        %618 = vmatprep.mubr.bf16.mxu0 0
        %619 = vmatmul.mubr.bf16.gmra.mrb[0].mxu0 %v581
        %v620 = vpop.f32.mrb[0].mxu0
        %v621 = vadd.f32 %v390, %v620
        %v622 = vpop.f32.mrb[0].mxu0
        %v623 = vpop.f32.mrb[0].mxu0
        %v624 = vpop.f32.mrb[0].mxu0
        %625 = vdwg.mxu0
        %v626 = vsel %vm512, %v621, -inf
        %627 = vmax.xlane.f32.xlu0 %v626
        %v628 = vpop.xlane.xlu0 %627
        %v629 = vsub.f32 %v621, %v628
        %v630 = vmul.f32 %v629, 1.442695
        %v631 = vpow.pop %v630
        %v632 = vsel %vm512, %v631, 0.0
        %633 = vadd.xlane.f32.xlu0 %v632
        %v634 = vpop.xlane.xlu0 %633
        %v635 = vrcp.pop %v634
        %v636 = vmul.f32 %v631, %v635
        %v637 = vpack.c.bf16 %v636, %v636
        %638 = vrot.lane.b32.xlu0 %v461, 48
        %v639 = vpop.permute.xlu0 %638
        %v641 = vsel %vm512, %v637, 0
        %v644 = vsel %vm530, %v639, 0
        %646 = vmatprep.subr.bf16.mxu0 0
        %647 = vmatpush1.bf16.msra.mxu0 %v644
        %648 = vmatprep.subr.bf16.mxu0 0
        %649 = vmatpush1.bf16.msra.mxu0 0
        %650 = vmatprep.subr.bf16.mxu0 0
        %651 = vmatpush1.bf16.msra.mxu0 0
        %652 = vmatprep.subr.bf16.mxu0 0
        %653 = vmatpush1.bf16.msra.mxu0 0
        %654 = vmatprep.subr.bf16.mxu0 0
        %655 = vmatpush1.bf16.msra.mxu0 0
        %656 = vmatprep.subr.bf16.mxu0 0
        %657 = vmatpush1.bf16.msra.mxu0 0
        %658 = vmatprep.subr.bf16.mxu0 0
        %659 = vmatpush1.bf16.msra.mxu0 0
        %660 = vmatprep.subr.bf16.mxu0 0
        %661 = vmatpush1.bf16.msra.mxu0 0
        %662 = vmatprep.subr.bf16.mxu0 0
        %663 = vmatpush1.bf16.msra.mxu0 0
        %664 = vmatprep.subr.bf16.mxu0 0
        %665 = vmatpush1.bf16.msra.mxu0 0
        %666 = vmatprep.subr.bf16.mxu0 0
        %667 = vmatpush1.bf16.msra.mxu0 0
        %668 = vmatprep.subr.bf16.mxu0 0
        %669 = vmatpush1.bf16.msra.mxu0 0
        %670 = vmatprep.subr.bf16.mxu0 0
        %671 = vmatpush1.bf16.msra.mxu0 0
        %672 = vmatprep.subr.bf16.mxu0 0
        %673 = vmatpush1.bf16.msra.mxu0 0
        %674 = vmatprep.subr.bf16.mxu0 0
        %675 = vmatpush1.bf16.msra.mxu0 0
        %676 = vmatprep.subr.bf16.mxu0 0
        %677 = vmatpush1.bf16.msra.mxu0 0
        %678 = vmatprep.mubr.bf16.mxu0 0
        %679 = vmatmul.mubr.bf16.gmra.mrb[0].mxu0 %v641
        %v680 = vpop.f32.mrb[0].mxu0
        %v681 = vadd.f32 0.0, %v680
        %v682 = vpop.f32.mrb[0].mxu0
        %v683 = vpop.f32.mrb[0].mxu0
        %v684 = vpop.f32.mrb[0].mxu0
        %685 = vdwg.mxu0
        %687 = vrot.lane.b32.xlu0 %v681, 16
        %v688 = vpop.permute.xlu0 %687
        %vm690 = vcmask 261248
        %691 = vst.msk [vmem:[#allocation2] sm:$0xff] %vm690, %v688
        %v692 = vld [vmem:[#allocation2] sm:$0xff]
        %v693 = vpack.c.bf16 %v692, %v692
        %v694 = vld [vmem:[%s4] sm:$0xf]
        %v695 = vld [vmem:[%s4 + $0x4] sm:$0xf]
        %v696 = vld [vmem:[%s4 + $0x8] sm:$0xf]
        %v697 = vld [vmem:[%s4 + $0xc] sm:$0xf]
        %v698 = vld [vmem:[%s8] sm:$0x1]
        %v699 = vlaneseq
        %v700 = vshrl.u32 %v699, 7
        %v701 = vsub.s32 0, %v700
        %v702 = vrot.slane %v698, %v701
        %v707 = vunpack.c.l.b16 %v694
        %v708 = vunpack.c.l.b16 %v695
        %v709 = vunpack.c.l.b16 %v696
        %v710 = vunpack.c.l.b16 %v697
        %v711 = vpack.c.b16 %v708, %v707
        %v712 = vpack.c.b16 %v710, %v709
        %v716 = vsel %vm415, %v693, 0
        %718 = vmatprep.subr.bf16.mxu0 0
        %719 = vmatpush1.bf16.msra.mxu0 %v711
        %720 = vmatprep.subr.bf16.mxu0 0
        %721 = vmatpush1.bf16.msra.mxu0 %v712
        %722 = vmatprep.subr.bf16.mxu0 0
        %723 = vmatpush1.bf16.msra.mxu0 0
        %724 = vmatprep.subr.bf16.mxu0 0
        %725 = vmatpush1.bf16.msra.mxu0 0
        %726 = vmatprep.subr.bf16.mxu0 0
        %727 = vmatpush1.bf16.msra.mxu0 0
        %728 = vmatprep.subr.bf16.mxu0 0
        %729 = vmatpush1.bf16.msra.mxu0 0
        %730 = vmatprep.subr.bf16.mxu0 0
        %731 = vmatpush1.bf16.msra.mxu0 0
        %732 = vmatprep.subr.bf16.mxu0 0
        %733 = vmatpush1.bf16.msra.mxu0 0
        %734 = vmatprep.subr.bf16.mxu0 0
        %735 = vmatpush1.bf16.msra.mxu0 0
        %736 = vmatprep.subr.bf16.mxu0 0
        %737 = vmatpush1.bf16.msra.mxu0 0
        %738 = vmatprep.subr.bf16.mxu0 0
        %739 = vmatpush1.bf16.msra.mxu0 0
        %740 = vmatprep.subr.bf16.mxu0 0
        %741 = vmatpush1.bf16.msra.mxu0 0
        %742 = vmatprep.subr.bf16.mxu0 0
        %743 = vmatpush1.bf16.msra.mxu0 0
        %744 = vmatprep.subr.bf16.mxu0 0
        %745 = vmatpush1.bf16.msra.mxu0 0
        %746 = vmatprep.subr.bf16.mxu0 0
        %747 = vmatpush1.bf16.msra.mxu0 0
        %748 = vmatprep.subr.bf16.mxu0 0
        %749 = vmatpush1.bf16.msra.mxu0 0
        %750 = vmatprep.mubr.bf16.mxu0 0
        %751 = vmatmul.mubr.bf16.gmra.mrb[0].mxu0 %v716
        %v752 = vpop.f32.mrb[0].mxu0
        %v753 = vadd.f32 %v702, %v752
        %v754 = vpop.f32.mrb[0].mxu0
        %v755 = vpop.f32.mrb[0].mxu0
        %v756 = vpop.f32.mrb[0].mxu0
        %757 = vdwg.mxu0
        %v758 = vadd.f32 %v383, %v753
        %v759 = vld [vmem:[%s8 + $0x1] sm:$0x1]
        %v760 = vld [vmem:[%s8 + $0x2] sm:$0x1]
        %v761 = vsel %vm415, %v758, 0.0
        %762 = vadd.xlane.f32.xlu0 %v761
        %v763 = vpop.xlane.xlu0 %762
        %v764 = vrcp.pop 32.0
        %v765 = vmul.f32 %v763, %v764
        %v766 = vsub.f32 %v758, %v765
        %v767 = vmul.f32 %v766, %v766
        %v768 = vsel %vm415, %v767, 0.0
        %769 = vadd.xlane.f32.xlu0 %v768
        %v770 = vpop.xlane.xlu0 %769
        %v771 = vmul.f32 %v770, %v764
        %v772 = vadd.f32 %v771, 1e-12
        %v773 = vrsqrt.pop %v772
        %v774 = vmul.f32 %v766, %v773
        %v775 = vlaneseq
        %v776 = vshrl.u32 %v775, 7
        %v777 = vsub.s32 0, %v776
        %v778 = vrot.slane %v759, %v777
        %v779 = vmul.f32 %v774, %v778
        %v780 = vlaneseq
        %v781 = vshrl.u32 %v780, 7
        %v782 = vsub.s32 0, %v781
        %v783 = vrot.slane %v760, %v782
        %v784 = vadd.f32 %v779, %v783
        %v785 = vpack.c.bf16 %v784, %v784
        %v786 = vld [vmem:[#allocation6] sm:$0xf]
        %v787 = vld [vmem:[#allocation6 + $0x4] sm:$0xf]
        %v788 = vld [vmem:[#allocation6 + $0x8] sm:$0xf]
        %v789 = vld [vmem:[#allocation6 + $0xc] sm:$0xf]
        %v790 = vld [vmem:[#allocation8] sm:$0x1]
        %v792 = vlaneseq
        %v793 = vshrl.u32 %v792, 7
        %v794 = vsub.s32 0, %v793
        %v795 = vrot.slane %v790, %v794
        %v801 = vunpack.c.l.b16 %v786
        %v802 = vunpack.c.l.b16 %v787
        %v803 = vunpack.c.l.b16 %v788
        %v804 = vunpack.c.l.b16 %v789
        %v805 = vpack.c.b16 %v802, %v801
        %v806 = vpack.c.b16 %v804, %v803
        %v810 = vsel %vm415, %v785, 0
        %812 = vmatprep.subr.bf16.mxu0 0
        %813 = vmatpush1.bf16.msra.mxu0 %v805
        %814 = vmatprep.subr.bf16.mxu0 0
        %815 = vmatpush1.bf16.msra.mxu0 %v806
        %816 = vmatprep.subr.bf16.mxu0 0
        %817 = vmatpush1.bf16.msra.mxu0 0
        %818 = vmatprep.subr.bf16.mxu0 0
        %819 = vmatpush1.bf16.msra.mxu0 0
        %820 = vmatprep.subr.bf16.mxu0 0
        %821 = vmatpush1.bf16.msra.mxu0 0
        %822 = vmatprep.subr.bf16.mxu0 0
        %823 = vmatpush1.bf16.msra.mxu0 0
        %824 = vmatprep.subr.bf16.mxu0 0
        %825 = vmatpush1.bf16.msra.mxu0 0
        %826 = vmatprep.subr.bf16.mxu0 0
        %827 = vmatpush1.bf16.msra.mxu0 0
        %828 = vmatprep.subr.bf16.mxu0 0
        %829 = vmatpush1.bf16.msra.mxu0 0
        %830 = vmatprep.subr.bf16.mxu0 0
        %831 = vmatpush1.bf16.msra.mxu0 0
        %832 = vmatprep.subr.bf16.mxu0 0
        %833 = vmatpush1.bf16.msra.mxu0 0
        %834 = vmatprep.subr.bf16.mxu0 0
        %835 = vmatpush1.bf16.msra.mxu0 0
        %836 = vmatprep.subr.bf16.mxu0 0
        %837 = vmatpush1.bf16.msra.mxu0 0
        %838 = vmatprep.subr.bf16.mxu0 0
        %839 = vmatpush1.bf16.msra.mxu0 0
        %840 = vmatprep.subr.bf16.mxu0 0
        %841 = vmatpush1.bf16.msra.mxu0 0
        %842 = vmatprep.subr.bf16.mxu0 0
        %843 = vmatpush1.bf16.msra.mxu0 0
        %844 = vmatprep.mubr.bf16.mxu0 0
        %845 = vmatmul.mubr.bf16.gmra.mrb[0].mxu0 %v810
        %v846 = vpop.f32.mrb[0].mxu0
        %v847 = vadd.f32 %v795, %v846
        %v848 = vpop.f32.mrb[0].mxu0
        %v849 = vpop.f32.mrb[0].mxu0
        %v850 = vpop.f32.mrb[0].mxu0
        %851 = vdwg.mxu0
        %v852 = vmul.f32 %v847, %v847
        %v853 = vmul.f32 %v847, %v852
        %v854 = vmul.f32 %v853, 0.044715
        %v855 = vadd.f32 %v847, %v854
        %v856 = vmul.f32 %v855, 0.7978846
        %v857 = vtanh.pop %v856
        %v858 = vadd.f32 %v857, 1.0
        %v859 = vmul.f32 %v858, 0.5
        %v860 = vmul.f32 %v847, %v859
        %v861 = vpack.c.bf16 %v860, %v860
        %v862 = vld [vmem:[%s7] sm:$0xf]
        %v863 = vld [vmem:[%s7 + $0x4] sm:$0xf]
        %v864 = vld [vmem:[%s7 + $0x8] sm:$0xf]
        %v865 = vld [vmem:[%s7 + $0xc] sm:$0xf]
        %v866 = vld [vmem:[%s7 + $0x10] sm:$0xf]
        %v867 = vld [vmem:[%s7 + $0x14] sm:$0xf]
        %v868 = vld [vmem:[%s7 + $0x18] sm:$0xf]
        %v869 = vld [vmem:[%s7 + $0x1c] sm:$0xf]
        %v870 = vld [vmem:[%s8 + $0x3] sm:$0x1]
        %v871 = vlaneseq
        %v872 = vshrl.u32 %v871, 7
        %v873 = vsub.s32 0, %v872
        %v874 = vrot.slane %v870, %v873
        %v883 = vunpack.c.l.b16 %v862
        %v884 = vunpack.c.l.b16 %v863
        %v885 = vunpack.c.l.b16 %v864
        %v886 = vunpack.c.l.b16 %v865
        %v887 = vunpack.c.l.b16 %v866
        %v888 = vunpack.c.l.b16 %v867
        %v889 = vunpack.c.l.b16 %v868
        %v890 = vunpack.c.l.b16 %v869
        %v891 = vpack.c.b16 %v884, %v883
        %v892 = vpack.c.b16 %v886, %v885
        %v893 = vpack.c.b16 %v888, %v887
        %v894 = vpack.c.b16 %v890, %v889
        %vm899 = vcmask 523264
        %v901 = vsel %vm899, %v861, 0
        %903 = vmatprep.subr.bf16.mxu0 0
        %904 = vmatpush1.bf16.msra.mxu0 %v891
        %905 = vmatprep.subr.bf16.mxu0 0
        %906 = vmatpush1.bf16.msra.mxu0 %v892
        %907 = vmatprep.subr.bf16.mxu0 0
        %908 = vmatpush1.bf16.msra.mxu0 %v893
        %909 = vmatprep.subr.bf16.mxu0 0
        %910 = vmatpush1.bf16.msra.mxu0 %v894
        %911 = vmatprep.subr.bf16.mxu0 0
        %912 = vmatpush1.bf16.msra.mxu0 0
        %913 = vmatprep.subr.bf16.mxu0 0
        %914 = vmatpush1.bf16.msra.mxu0 0
        %915 = vmatprep.subr.bf16.mxu0 0
        %916 = vmatpush1.bf16.msra.mxu0 0
        %917 = vmatprep.subr.bf16.mxu0 0
        %918 = vmatpush1.bf16.msra.mxu0 0
        %919 = vmatprep.subr.bf16.mxu0 0
        %920 = vmatpush1.bf16.msra.mxu0 0
        %921 = vmatprep.subr.bf16.mxu0 0
        %922 = vmatpush1.bf16.msra.mxu0 0
        %923 = vmatprep.subr.bf16.mxu0 0
        %924 = vmatpush1.bf16.msra.mxu0 0
        %925 = vmatprep.subr.bf16.mxu0 0
        %926 = vmatpush1.bf16.msra.mxu0 0
        %927 = vmatprep.subr.bf16.mxu0 0
        %928 = vmatpush1.bf16.msra.mxu0 0
        %929 = vmatprep.subr.bf16.mxu0 0
        %930 = vmatpush1.bf16.msra.mxu0 0
        %931 = vmatprep.subr.bf16.mxu0 0
        %932 = vmatpush1.bf16.msra.mxu0 0
        %933 = vmatprep.subr.bf16.mxu0 0
        %934 = vmatpush1.bf16.msra.mxu0 0
        %935 = vmatprep.mubr.bf16.mxu0 0
        %936 = vmatmul.mubr.bf16.gmra.mrb[0].mxu0 %v901
        %v937 = vpop.f32.mrb[0].mxu0
        %v938 = vadd.f32 %v874, %v937
        %v939 = vpop.f32.mrb[0].mxu0
        %v940 = vpop.f32.mrb[0].mxu0
        %v941 = vpop.f32.mrb[0].mxu0
        %942 = vdwg.mxu0
        %v943 = vadd.f32 %v784, %v938
        %v944 = vld [vmem:[%s8 + $0x4] sm:$0x1]
        %v945 = vld [vmem:[%s8 + $0x5] sm:$0x1]
        %v946 = vsel %vm415, %v943, 0.0
        %947 = vadd.xlane.f32.xlu0 %v946
        %v948 = vpop.xlane.xlu0 %947
        %v949 = vmul.f32 %v948, %v764
        %v950 = vsub.f32 %v943, %v949
        %v951 = vmul.f32 %v950, %v950
        %v952 = vsel %vm415, %v951, 0.0
        %953 = vadd.xlane.f32.xlu0 %v952
        %v954 = vpop.xlane.xlu0 %953
        %v955 = vmul.f32 %v954, %v764
        %v956 = vadd.f32 %v955, 1e-12
        %v957 = vrsqrt.pop %v956
        %v958 = vmul.f32 %v950, %v957
        %v959 = vlaneseq
        %v960 = vshrl.u32 %v959, 7
        %v961 = vsub.s32 0, %v960
        %v962 = vrot.slane %v944, %v961
        %v963 = vmul.f32 %v958, %v962
        %v964 = vlaneseq
        %v965 = vshrl.u32 %v964, 7
        %v966 = vsub.s32 0, %v965
        %v967 = vrot.slane %v945, %v966
        %v968 = vadd.f32 %v963, %v967
        %969 = vst.msk [vmem:[%s374] sm:$0xff] %vm415, %v968
        %s970 = sand.u32 %s232, 1
        %s971 = scalar_lea.sflag [#allocation5], %s970
        %s972 = sand.u32 %s232, 1
        %s973 = smul.addr %s972, 8
        %s974 = scalar_lea.vmem [#allocation9], %s973
        // Predicated region
        $region69: #{tpu_custom_call.1} parent=55 // pred_check
          %p975 = pneg %p242
        $region70: #{tpu_custom_call.1} parent=55 // pred_check_branch
          %977 = sbr.rel (%p975) target = $region72
        $region71: #{tpu_custom_call.1} parent=55 // pred_region
          %s979 = ssub.s32 128, 128
          %980 = vsyncadd %s971, %s979
          %s981 = smul.addr %s25, 128
          %s982 = scalar_lea.hbm %s9, %s981
          %s984 = sshll.u32 %s974, 4
          %s985 = int_to_ptr.vmem [resolvable:$true] %s984
          %987 = dma.vmem_to_hbm [thread:$0]  %s985, 128, %s982, %s971
        $region72: #{tpu_custom_call.1} parent=55 // pred_fallthru
          _
      $region56: #{tpu_custom_call.1} parent=5 // pred_fallthru
        _
      %p988 = scmp.le.s32.totalorder 2, %s20
      // Predicated region
      $region73: #{tpu_custom_call.1} parent=5 // pred_check
        %p989 = pneg %p988
      $region74: #{tpu_custom_call.1} parent=5 // pred_check_branch
        %991 = sbr.rel (%p989) target = $region76
      $region75: #{tpu_custom_call.1} parent=5 // pred_region
        %s992 = ssub.s32 %s20, 2
        // Predicated region
        $region77: #{tpu_custom_call.1} parent=75 // pred_check
          %p993 = pneg %p248
        $region78: #{tpu_custom_call.1} parent=75 // pred_check_branch
          %995 = sbr.rel (%p993) target = $region80
        $region79: #{tpu_custom_call.1} parent=75 // pred_region
          %s996 = sand.u32 %s233, 1
          %s997 = scalar_lea.sflag [#allocation5], %s996
          %s998 = sand.u32 %s233, 1
          %s999 = smul.addr %s998, 8
          %s1000 = scalar_lea.vmem [#allocation9], %s999
          %1001 = dma.done %s997, 128
        $region80: #{tpu_custom_call.1} parent=75 // pred_fallthru
          _
      $region76: #{tpu_custom_call.1} parent=5 // pred_fallthru
        _
    $region6: #{tpu_custom_call.1} parent=1 // loop_footer
      %s24 = sadd.s32 1, %s20
    $region7: #{tpu_custom_call.1} parent=1 // loop_footer_branch
      %19 = sbr.rel target = $region3
    $region8: #{tpu_custom_call.1} parent=1 // loop_exit
      _
    %1002 = vsyncpa [#allocation4], 1
    %s1003 = scalar_lea.sflag [#allocation4], 1
    %1004 = vsyncpa %s1003, 1
    %1005 = vsyncpa [#allocation7], 1
    %1006 = vsyncpa [#allocation5], 1
    %s1007 = scalar_lea.sflag [#allocation5], 1
    %1008 = vsyncpa %s1007, 1

</llo_original>
